<compile_context>
chip_gen: v7x
topology: tpu7x:2x2x1
jax: 0.10.0
libtpu: 0.0.40
codegen_flags: <defaults>
</compile_context>

<pallas_src>
import functools

import jax
import jax.numpy as jnp
from jax.experimental import pallas as pl
from jax.experimental.pallas import tpu as pltpu


INPUT_SIZE = 256
HIDDEN_SIZE = 128
NUM_CLASSES = 10
BATCH = 8

LANE = 128          # vreg lane width
BF16_ROWS = 16      # bf16 packs 2 rows per sublane -> prefer 16-row tiles


def _round_up(n, m):
    return ((n + m - 1) // m) * m


def fcnet_kernel(x_ref, w1_ref, b1_ref, w2_ref, b2_ref, o_ref):
    nc = o_ref.shape[-1]
    # fc1: cast the f32 x tile to bf16 in-registers (saves a whole wrapper-side
    # cast pass over x); MXU matmul with f32 accumulation.
    x = x_ref[...].astype(w1_ref.dtype)
    h = jnp.dot(x, w1_ref[...], preferred_element_type=jnp.float32)
    # Bias + ReLU in f32 (matches PyTorch numerics; no bf16 VPU dependence).
    h = jnp.maximum(h + b1_ref[...], 0.0)
    # fc2: bf16 activations against the lane-padded (hidden, 128) weight for a
    # clean MXU tile; slice back to the real class count for the store.
    logits = jnp.dot(h.astype(w2_ref.dtype), w2_ref[...],
                     preferred_element_type=jnp.float32)
    o_ref[...] = (logits[:, :nc] + b2_ref[...]).astype(o_ref.dtype)


def prepare_fcnet_params(w1, b1, w2, b2):
    """One-time conversion of PyTorch-layout params to kernel layout.

    w1: (hidden, input)   b1: (hidden,)
    w2: (classes, hidden) b2: (classes,)

    Returns (w1_t, b1_r, w2_p, b2_r):
      w1_t: (input, hidden)  bf16
      b1_r: (1, hidden)      f32
      w2_p: (hidden, 128)    bf16, zero-padded classes -> lane-dense MXU tile
      b2_r: (1, classes)     f32
    """
    hidden, _ = w1.shape
    nc = w2.shape[0]
    nc_pad = _round_up(nc, LANE)
    w1_t = jnp.asarray(w1, jnp.float32).T.astype(jnp.bfloat16)
    b1_r = jnp.asarray(b1, jnp.float32).reshape(1, hidden)
    w2_p = jnp.zeros((hidden, nc_pad), jnp.bfloat16).at[:, :nc].set(
        jnp.asarray(w2, jnp.float32).T.astype(jnp.bfloat16))
    b2_r = jnp.asarray(b2, jnp.float32).reshape(1, nc)
    return w1_t, b1_r, w2_p, b2_r


@functools.partial(jax.jit, static_argnames=("block_b",))
def fcnet_forward(x, w1_t, b1, w2_p, b2, *, block_b=512):
    """FCNet forward: ReLU(x @ w1_t + b1) @ w2 + b2, x is f32 (B, input)."""
    B, in_size = x.shape
    hidden = w1_t.shape[1]
    nc_pad = w2_p.shape[1]
    nc = b2.shape[1]

    # Batch tile:
    #  * tiny B           -> one full-array block (always a legal block shape),
    #  * moderate B       -> split ~in half (>=2 grid steps so v7x's 2 TCs both
    #                        get work), rounded to 16 rows for bf16 packing,
    #  * large B          -> block_b rows per step to amortize per-step cost.
    if B <= BF16_ROWS:
        tb = B
    elif B <= 2 * block_b:
        tb = min(_round_up(pl.cdiv(B, 2), BF16_ROWS), _round_up(B, BF16_ROWS))
    else:
        tb = block_b
    grid = (pl.cdiv(B, tb),)   # last block may be partial; stores are clipped

    out = pl.pallas_call(
        fcnet_kernel,
        out_shape=jax.ShapeDtypeStruct((B, nc), jnp.float32),
        grid=grid,
        in_specs=[
            pl.BlockSpec((tb, in_size), lambda i: (i, 0)),       # x tile (pipelined)
            pl.BlockSpec((in_size, hidden), lambda i: (0, 0)),   # w1: VMEM-resident
            pl.BlockSpec((1, hidden), lambda i: (0, 0)),         # b1: VMEM-resident
            pl.BlockSpec((hidden, nc_pad), lambda i: (0, 0)),    # w2: VMEM-resident
            pl.BlockSpec((1, nc), lambda i: (0, 0)),             # b2: VMEM-resident
        ],
        out_specs=pl.BlockSpec((tb, nc), lambda i: (i, 0)),      # unpadded logits
        compiler_params=pltpu.CompilerParams(
            # Batch rows are independent -> lets v7x shard the grid across its
            # two TensorCores; harmless on single-TC v5e/v6e.
            dimension_semantics=("parallel",),
        ),
    )(x, w1_t, b1, w2_p, b2)
    return out


if __name__ == "__main__":
    key = jax.random.PRNGKey(0)
    kx, k1, k2, k3, k4, kx2 = jax.random.split(key, 6)

    # Deterministic init mimicking nn.Linear defaults (uniform +- 1/sqrt(fan_in)),
    # weights in PyTorch (out_features, in_features) layout.
    bound1 = 1.0 / jnp.sqrt(INPUT_SIZE)
    bound2 = 1.0 / jnp.sqrt(HIDDEN_SIZE)
    w1 = jax.random.uniform(k1, (HIDDEN_SIZE, INPUT_SIZE), jnp.float32,
                            -bound1, bound1)
    b1 = jax.random.uniform(k2, (HIDDEN_SIZE,), jnp.float32, -bound1, bound1)
    w2 = jax.random.uniform(k3, (NUM_CLASSES, HIDDEN_SIZE), jnp.float32,
                            -bound2, bound2)
    b2 = jax.random.uniform(k4, (NUM_CLASSES,), jnp.float32, -bound2, bound2)

    # One-time parameter prep (transpose / bf16 cast / lane-pad fc2).
    params = prepare_fcnet_params(w1, b1, w2, b2)

    def ref_f32(xv):
        return jnp.maximum(xv @ w1.T + b1, 0.0) @ w2.T + b2

    def ref_bf16(xv):
        h = jnp.maximum(
            jnp.dot(xv.astype(jnp.bfloat16), w1.T.astype(jnp.bfloat16),
                    preferred_element_type=jnp.float32) + b1, 0.0)
        return jnp.dot(h.astype(jnp.bfloat16), w2.T.astype(jnp.bfloat16),
                       preferred_element_type=jnp.float32) + b2

    # Case 1: tiny batch (single full-array block).
    # Case 2: batch 100 -> tb=64, grid=2 with a partial last block (clipped stores).
    for bsz, kk in ((BATCH, kx), (100, kx2)):
        x = jax.random.normal(kk, (bsz, INPUT_SIZE), jnp.float32)
        out = jax.block_until_ready(fcnet_forward(x, *params))
        assert out.shape == (bsz, NUM_CLASSES)

        # Reference 1: plain JAX mirroring the kernel's bf16-in / f32-acc math.
        r_bf = ref_bf16(x)
        assert jnp.allclose(out, r_bf, atol=5e-3, rtol=5e-3), \
            float(jnp.max(jnp.abs(out - r_bf)))

        # Reference 2: exact f32 PyTorch math, with a bf16-sized tolerance.
        r_f32 = ref_f32(x)
        assert jnp.allclose(out, r_f32, atol=3e-2, rtol=3e-2), \
            float(jnp.max(jnp.abs(out - r_f32)))

    print("KERNEL_OK")
</pallas_src>

<mosaic_0001>
module attributes {stable_mosaic.version = 11 : i64} {
  func.func @fcnet_kernel(%arg0: i32, %arg1: memref<8x256xf32, #tpu.memory_space<vmem>>, %arg2: memref<256x128xbf16, #tpu.memory_space<vmem>>, %arg3: memref<1x128xf32, #tpu.memory_space<vmem>>, %arg4: memref<128x128xbf16, #tpu.memory_space<vmem>>, %arg5: memref<1x10xf32, #tpu.memory_space<vmem>>, %arg6: memref<8x10xf32, #tpu.memory_space<vmem>>) attributes {dimension_semantics = [#tpu.dimension_semantics<parallel>], iteration_bounds = array<i64: 1>, scalar_prefetch = 0 : i64, scratch_operands = 0 : i64, tpu.core_type = #tpu.core_type<tc>, window_params = [{transform_indices = @transform_0, window_bounds = array<i64: 8, 256>}, {pipeline_mode = #tpu.pipeline_mode<synchronous>, transform_indices = @transform_1, window_bounds = array<i64: 256, 128>}, {pipeline_mode = #tpu.pipeline_mode<synchronous>, transform_indices = @transform_2, window_bounds = array<i64: 1, 128>}, {pipeline_mode = #tpu.pipeline_mode<synchronous>, transform_indices = @transform_3, window_bounds = array<i64: 128, 128>}, {pipeline_mode = #tpu.pipeline_mode<synchronous>, transform_indices = @transform_4, window_bounds = array<i64: 1, 10>}, {transform_indices = @transform_5, window_bounds = array<i64: 8, 10>}]} {
    %c0 = arith.constant 0 : index
    %c0_0 = arith.constant 0 : index
    %0 = vector.load %arg1[%c0, %c0_0] : memref<8x256xf32, #tpu.memory_space<vmem>>, vector<8x256xf32>
    %1 = arith.truncf %0 : vector<8x256xf32> to vector<8x256xbf16>
    %c0_1 = arith.constant 0 : index
    %c0_2 = arith.constant 0 : index
    %2 = vector.load %arg2[%c0_1, %c0_2] : memref<256x128xbf16, #tpu.memory_space<vmem>>, vector<256x128xbf16>
    %cst = arith.constant dense<0.000000e+00> : vector<8x128xf32>
    %3 = tpu.matmul %1, %2, %cst {dimension_numbers = #tpu.dot_dimension_numbers<[1], [0], [0], [1], [0, 0, 1, 1], [], []>} : vector<8x256xbf16>, vector<256x128xbf16>, vector<8x128xf32> -> vector<8x128xf32>
    %c0_3 = arith.constant 0 : index
    %c0_4 = arith.constant 0 : index
    %4 = vector.load %arg3[%c0_3, %c0_4] : memref<1x128xf32, #tpu.memory_space<vmem>>, vector<1x128xf32>
    %5 = vector.broadcast %4 : vector<1x128xf32> to vector<8x128xf32>
    %6 = arith.addf %3, %5 : vector<8x128xf32>
    %cst_5 = arith.constant 0.000000e+00 : f32
    %7 = vector.broadcast %cst_5 : f32 to vector<8x128xf32>
    %8 = arith.maximumf %6, %7 : vector<8x128xf32>
    %9 = arith.truncf %8 : vector<8x128xf32> to vector<8x128xbf16>
    %c0_6 = arith.constant 0 : index
    %c0_7 = arith.constant 0 : index
    %10 = vector.load %arg4[%c0_6, %c0_7] : memref<128x128xbf16, #tpu.memory_space<vmem>>, vector<128x128xbf16>
    %cst_8 = arith.constant dense<0.000000e+00> : vector<8x128xf32>
    %11 = tpu.matmul %9, %10, %cst_8 {dimension_numbers = #tpu.dot_dimension_numbers<[1], [0], [0], [1], [0, 0, 1, 1], [], []>} : vector<8x128xbf16>, vector<128x128xbf16>, vector<8x128xf32> -> vector<8x128xf32>
    %12 = vector.extract_strided_slice %11 {offsets = [0, 0], sizes = [8, 10], strides = [1, 1]} : vector<8x128xf32> to vector<8x10xf32>
    %c0_9 = arith.constant 0 : index
    %c0_10 = arith.constant 0 : index
    %13 = vector.load %arg5[%c0_9, %c0_10] : memref<1x10xf32, #tpu.memory_space<vmem>>, vector<1x10xf32>
    %14 = vector.broadcast %13 : vector<1x10xf32> to vector<8x10xf32>
    %15 = arith.addf %12, %14 : vector<8x10xf32>
    %c0_11 = arith.constant 0 : index
    %c0_12 = arith.constant 0 : index
    %16 = vector.load %arg6[%c0_11, %c0_12] : memref<8x10xf32, #tpu.memory_space<vmem>>, vector<8x10xf32>
    tpu.vector_store %arg6[%c0_11, %c0_12], %15 {strides = array<i32>} : memref<8x10xf32, #tpu.memory_space<vmem>>, vector<8x10xf32>,
    return
  }
  func.func @transform_0(%arg0: i32) -> (i32, i32) {
    %c0_i32 = arith.constant 0 : i32
    %c0_i32_0 = arith.constant 0 : i32
    return %arg0, %c0_i32 : i32, i32
  }
  func.func @transform_1(%arg0: i32) -> (i32, i32) {
    %c0_i32 = arith.constant 0 : i32
    %c0_i32_0 = arith.constant 0 : i32
    %c0_i32_1 = arith.constant 0 : i32
    return %c0_i32, %c0_i32_0 : i32, i32
  }
  func.func @transform_2(%arg0: i32) -> (i32, i32) {
    %c0_i32 = arith.constant 0 : i32
    %c0_i32_0 = arith.constant 0 : i32
    %c0_i32_1 = arith.constant 0 : i32
    return %c0_i32, %c0_i32_0 : i32, i32
  }
  func.func @transform_3(%arg0: i32) -> (i32, i32) {
    %c0_i32 = arith.constant 0 : i32
    %c0_i32_0 = arith.constant 0 : i32
    %c0_i32_1 = arith.constant 0 : i32
    return %c0_i32, %c0_i32_0 : i32, i32
  }
  func.func @transform_4(%arg0: i32) -> (i32, i32) {
    %c0_i32 = arith.constant 0 : i32
    %c0_i32_0 = arith.constant 0 : i32
    %c0_i32_1 = arith.constant 0 : i32
    return %c0_i32, %c0_i32_0 : i32, i32
  }
  func.func @transform_5(%arg0: i32) -> (i32, i32) {
    %c0_i32 = arith.constant 0 : i32
    %c0_i32_0 = arith.constant 0 : i32
    return %arg0, %c0_i32 : i32, i32
  }
}

</mosaic_0001>

<llo_original>
// kernel: fcnet_forward.1
$region0: #{fcnet_forward.1}
  #allocation0 [shape = 'u32[]', space=smem, size = 0x4, offset = 0x4, fixed_abs, tag = 'smem constant byte address 0x4 - core index']
  #allocation1 [shape = 'u32[144,128]{1,0:T(1,128)}', space=vmem, size = 0x12000, scoped, tag = 'internal scratch']
  %s0 = inlined_call_operand.hbm [shape: f32[8,256], index: 0, kind: input, shape index: {}]
  %s1 = inlined_call_operand.hbm [shape: bf16[256,128], index: 1, kind: input, shape index: {}]
  %s2 = inlined_call_operand.vmem [shape: f32[1,128], index: 2, kind: input, shape index: {}]
  %s3 = inlined_call_operand.hbm [shape: bf16[128,128], index: 3, kind: input, shape index: {}]
  %s4 = inlined_call_operand.vmem [shape: f32[1,10], index: 4, kind: input, shape index: {}]
  %s5 = inlined_call_operand.hbm [shape: f32[8,10], index: 5, kind: output, shape index: {}]
  %s6 = sld [smem:[#allocation0]]
  $region42: #{fcnet_forward.1} parent=0
    _
  %s8 = ssub.s32 1, %s6
  %s9 = scalar_select 0, %s8, %s6
  $region1: #{fcnet_forward.1} parent=0
    #allocation2 [shape = 'u8[8192]{0}', space=vmem, size = 0x2000, scoped, tag = 'input window, operand 0, single buffered']
    #allocation3 [shape = 's32[1]{0}', space=sflag, size = 0x4, scoped, tag = 'scoped memory for fcnet_forward.1']
    #allocation4 [shape = 's32[1]{0}', space=sflag, size = 0x4, scoped, tag = 'scoped memory for fcnet_forward.1']
    #allocation5 [shape = 'u8[65536]{0}', space=vmem, size = 0x10000, scoped, tag = 'input window, operand 1, single buffered']
    #allocation6 [shape = 's32[1]{0}', space=sflag, size = 0x4, scoped, tag = 'scoped memory for fcnet_forward.1']
    #allocation7 [shape = 'u8[32768]{0}', space=vmem, size = 0x8000, scoped, tag = 'input window, operand 3, single buffered']
    #allocation8 [shape = 'u8[4096]{0}', space=vmem, size = 0x1000, scoped, tag = 'output window, operand 0, single buffered']
    %10 = vsyncpa [#allocation3], 0
    %11 = vsyncpa [#allocation6], 0
    %12 = vsyncpa [#allocation4], 0
    // Predicated region
    $region2: #{fcnet_forward.1} parent=1 // pred_check
      _
    $region3: #{fcnet_forward.1} parent=1 // pred_check_branch
      %14 = sbr.rel (0) target = $region5
    $region4: #{fcnet_forward.1} parent=1 // pred_region
      %s16 = ssub.s32 256, 256
      %17 = vsyncadd [#allocation3], %s16
      %s19 = sshll.u32 [#allocation2], 4
      %s20 = int_to_ptr.vmem [resolvable:$true] %s19
      %22 = dma.hbm_to_vmem [thread:$0]  %s0, 256, %s20, [#allocation3]
    $region5: #{fcnet_forward.1} parent=1 // pred_fallthru
      _
    // Predicated region
    $region6: #{fcnet_forward.1} parent=1 // pred_check
      _
    $region7: #{fcnet_forward.1} parent=1 // pred_check_branch
      %24 = sbr.rel (0) target = $region9
    $region8: #{fcnet_forward.1} parent=1 // pred_region
      %s26 = ssub.s32 2048, 2048
      %27 = vsyncadd [#allocation6], %s26
      %s28 = sshll.u32 [#allocation5], 4
      %s29 = int_to_ptr.vmem [resolvable:$true] %s28
      %34 = dma.hbm_to_vmem [thread:$0]  %s1, 2048, %s29, [#allocation6], 64, 64, 4
    $region9: #{fcnet_forward.1} parent=1 // pred_fallthru
      _
    // Predicated region
    $region10: #{fcnet_forward.1} parent=1 // pred_check
      _
    $region11: #{fcnet_forward.1} parent=1 // pred_check_branch
      %36 = sbr.rel (0) target = $region13
    $region12: #{fcnet_forward.1} parent=1 // pred_region
      _
    $region13: #{fcnet_forward.1} parent=1 // pred_fallthru
      _
    // Predicated region
    $region14: #{fcnet_forward.1} parent=1 // pred_check
      _
    $region15: #{fcnet_forward.1} parent=1 // pred_check_branch
      %38 = sbr.rel (0) target = $region17
    $region16: #{fcnet_forward.1} parent=1 // pred_region
      %s40 = ssub.s32 1024, 1024
      %41 = vsyncadd [#allocation6], %s40
      %s42 = sshll.u32 [#allocation7], 4
      %s43 = int_to_ptr.vmem [resolvable:$true] %s42
      %48 = dma.hbm_to_vmem [thread:$0]  %s3, 1024, %s43, [#allocation6], 64, 64, 4
    $region17: #{fcnet_forward.1} parent=1 // pred_fallthru
      _
    // Predicated region
    $region18: #{fcnet_forward.1} parent=1 // pred_check
      _
    $region19: #{fcnet_forward.1} parent=1 // pred_check_branch
      %50 = sbr.rel (0) target = $region21
    $region20: #{fcnet_forward.1} parent=1 // pred_region
      _
    $region21: #{fcnet_forward.1} parent=1 // pred_fallthru
      _
    // Predicated region
    $region22: #{fcnet_forward.1} parent=1 // pred_check
      _
    $region23: #{fcnet_forward.1} parent=1 // pred_check_branch
      %52 = sbr.rel (0) target = $region25
    $region24: #{fcnet_forward.1} parent=1 // pred_region
      %53 = dma.done [#allocation3], 256
    $region25: #{fcnet_forward.1} parent=1 // pred_fallthru
      _
    // Predicated region
    $region26: #{fcnet_forward.1} parent=1 // pred_check
      _
    $region27: #{fcnet_forward.1} parent=1 // pred_check_branch
      %55 = sbr.rel (0) target = $region29
    $region28: #{fcnet_forward.1} parent=1 // pred_region
      %56 = dma.done [#allocation6], 2048
    $region29: #{fcnet_forward.1} parent=1 // pred_fallthru
      _
    // Predicated region
    $region30: #{fcnet_forward.1} parent=1 // pred_check
      _
    $region31: #{fcnet_forward.1} parent=1 // pred_check_branch
      %58 = sbr.rel (0) target = $region33
    $region32: #{fcnet_forward.1} parent=1 // pred_region
      %59 = dma.done [#allocation6], 1024
    $region33: #{fcnet_forward.1} parent=1 // pred_fallthru
      _
    %v61 = vld [vmem:[#allocation2] sm:$0xff]
    %v62 = vld [vmem:[#allocation2 + $0x8] sm:$0xff]
    %v63 = vpack.c.bf16 %v61, %v61
    %v64 = vpack.c.bf16 %v62, %v62
    %v65 = vld [vmem:[#allocation5] sm:$0xf]
    %v66 = vld [vmem:[#allocation5 + $0x4] sm:$0xf]
    %v67 = vld [vmem:[#allocation5 + $0x8] sm:$0xf]
    %v68 = vld [vmem:[#allocation5 + $0xc] sm:$0xf]
    %v69 = vld [vmem:[#allocation5 + $0x10] sm:$0xf]
    %v70 = vld [vmem:[#allocation5 + $0x14] sm:$0xf]
    %v71 = vld [vmem:[#allocation5 + $0x18] sm:$0xf]
    %v72 = vld [vmem:[#allocation5 + $0x1c] sm:$0xf]
    %v73 = vld [vmem:[#allocation5 + $0x20] sm:$0xf]
    %v74 = vld [vmem:[#allocation5 + $0x24] sm:$0xf]
    %v75 = vld [vmem:[#allocation5 + $0x28] sm:$0xf]
    %v76 = vld [vmem:[#allocation5 + $0x2c] sm:$0xf]
    %v77 = vld [vmem:[#allocation5 + $0x30] sm:$0xf]
    %v78 = vld [vmem:[#allocation5 + $0x34] sm:$0xf]
    %v79 = vld [vmem:[#allocation5 + $0x38] sm:$0xf]
    %v80 = vld [vmem:[#allocation5 + $0x3c] sm:$0xf]
    %v81 = vld [vmem:[#allocation5 + $0x40] sm:$0xf]
    %v82 = vld [vmem:[#allocation5 + $0x44] sm:$0xf]
    %v83 = vld [vmem:[#allocation5 + $0x48] sm:$0xf]
    %v84 = vld [vmem:[#allocation5 + $0x4c] sm:$0xf]
    %v85 = vld [vmem:[#allocation5 + $0x50] sm:$0xf]
    %v86 = vld [vmem:[#allocation5 + $0x54] sm:$0xf]
    %v87 = vld [vmem:[#allocation5 + $0x58] sm:$0xf]
    %v88 = vld [vmem:[#allocation5 + $0x5c] sm:$0xf]
    %v89 = vld [vmem:[#allocation5 + $0x60] sm:$0xf]
    %v90 = vld [vmem:[#allocation5 + $0x64] sm:$0xf]
    %v91 = vld [vmem:[#allocation5 + $0x68] sm:$0xf]
    %v92 = vld [vmem:[#allocation5 + $0x6c] sm:$0xf]
    %v93 = vld [vmem:[#allocation5 + $0x70] sm:$0xf]
    %v94 = vld [vmem:[#allocation5 + $0x74] sm:$0xf]
    %v95 = vld [vmem:[#allocation5 + $0x78] sm:$0xf]
    %v96 = vld [vmem:[#allocation5 + $0x7c] sm:$0xf]
    %v97 = vld [vmem:[%s2] sm:$0x1]
    %v99 = vlaneseq
    %v100 = vshrl.u32 %v99, 7
    %v101 = vsub.s32 0, %v100
    %v102 = vrot.slane %v97, %v101
    %v136 = vunpack.c.l.b16 %v65
    %v137 = vunpack.c.l.b16 %v66
    %v138 = vunpack.c.l.b16 %v67
    %v139 = vunpack.c.l.b16 %v68
    %v140 = vunpack.c.l.b16 %v69
    %v141 = vunpack.c.l.b16 %v70
    %v142 = vunpack.c.l.b16 %v71
    %v143 = vunpack.c.l.b16 %v72
    %v144 = vunpack.c.l.b16 %v73
    %v145 = vunpack.c.l.b16 %v74
    %v146 = vunpack.c.l.b16 %v75
    %v147 = vunpack.c.l.b16 %v76
    %v148 = vunpack.c.l.b16 %v77
    %v149 = vunpack.c.l.b16 %v78
    %v150 = vunpack.c.l.b16 %v79
    %v151 = vunpack.c.l.b16 %v80
    %v152 = vunpack.c.l.b16 %v81
    %v153 = vunpack.c.l.b16 %v82
    %v154 = vunpack.c.l.b16 %v83
    %v155 = vunpack.c.l.b16 %v84
    %v156 = vunpack.c.l.b16 %v85
    %v157 = vunpack.c.l.b16 %v86
    %v158 = vunpack.c.l.b16 %v87
    %v159 = vunpack.c.l.b16 %v88
    %v160 = vunpack.c.l.b16 %v89
    %v161 = vunpack.c.l.b16 %v90
    %v162 = vunpack.c.l.b16 %v91
    %v163 = vunpack.c.l.b16 %v92
    %v164 = vunpack.c.l.b16 %v93
    %v165 = vunpack.c.l.b16 %v94
    %v166 = vunpack.c.l.b16 %v95
    %v167 = vunpack.c.l.b16 %v96
    %v168 = vpack.c.b16 %v137, %v136
    %v169 = vpack.c.b16 %v139, %v138
    %v170 = vpack.c.b16 %v141, %v140
    %v171 = vpack.c.b16 %v143, %v142
    %v172 = vpack.c.b16 %v145, %v144
    %v173 = vpack.c.b16 %v147, %v146
    %v174 = vpack.c.b16 %v149, %v148
    %v175 = vpack.c.b16 %v151, %v150
    %v176 = vpack.c.b16 %v153, %v152
    %v177 = vpack.c.b16 %v155, %v154
    %v178 = vpack.c.b16 %v157, %v156
    %v179 = vpack.c.b16 %v159, %v158
    %v180 = vpack.c.b16 %v161, %v160
    %v181 = vpack.c.b16 %v163, %v162
    %v182 = vpack.c.b16 %v165, %v164
    %v183 = vpack.c.b16 %v167, %v166
    %200 = vmatprep.subr.bf16.mxu0 0
    %201 = vmatpush1.bf16.msra.mxu0 %v168
    %202 = vmatprep.subr.bf16.mxu0 0
    %203 = vmatpush1.bf16.msra.mxu0 %v169
    %204 = vmatprep.subr.bf16.mxu0 0
    %205 = vmatpush1.bf16.msra.mxu0 %v170
    %206 = vmatprep.subr.bf16.mxu0 0
    %207 = vmatpush1.bf16.msra.mxu0 %v171
    %208 = vmatprep.subr.bf16.mxu0 0
    %209 = vmatpush1.bf16.msra.mxu0 %v172
    %210 = vmatprep.subr.bf16.mxu0 0
    %211 = vmatpush1.bf16.msra.mxu0 %v173
    %212 = vmatprep.subr.bf16.mxu0 0
    %213 = vmatpush1.bf16.msra.mxu0 %v174
    %214 = vmatprep.subr.bf16.mxu0 0
    %215 = vmatpush1.bf16.msra.mxu0 %v175
    %216 = vmatprep.subr.bf16.mxu0 0
    %217 = vmatpush1.bf16.msra.mxu0 %v176
    %218 = vmatprep.subr.bf16.mxu0 0
    %219 = vmatpush1.bf16.msra.mxu0 %v177
    %220 = vmatprep.subr.bf16.mxu0 0
    %221 = vmatpush1.bf16.msra.mxu0 %v178
    %222 = vmatprep.subr.bf16.mxu0 0
    %223 = vmatpush1.bf16.msra.mxu0 %v179
    %224 = vmatprep.subr.bf16.mxu0 0
    %225 = vmatpush1.bf16.msra.mxu0 %v180
    %226 = vmatprep.subr.bf16.mxu0 0
    %227 = vmatpush1.bf16.msra.mxu0 %v181
    %228 = vmatprep.subr.bf16.mxu0 0
    %229 = vmatpush1.bf16.msra.mxu0 %v182
    %230 = vmatprep.subr.bf16.mxu0 0
    %231 = vmatpush1.bf16.msra.mxu0 %v183
    %232 = vmatprep.mubr.bf16.mxu0 %v64
    %233 = vmatmul.mubr.bf16.gmra.mrb[0].mxu0 %v63
    %v234 = vpop.f32.mrb[0].mxu0
    %v235 = vadd.f32 %v102, %v234
    %v236 = vpop.f32.mrb[0].mxu0
    %v237 = vpop.f32.mrb[0].mxu0
    %v238 = vpop.f32.mrb[0].mxu0
    %239 = vdwg.mxu0
    %v240 = vmax.f32 %v235, 0.0
    %v241 = vpack.c.bf16 %v240, %v240
    %v242 = vld [vmem:[#allocation7] sm:$0xf]
    %v243 = vld [vmem:[#allocation7 + $0x4] sm:$0xf]
    %v244 = vld [vmem:[#allocation7 + $0x8] sm:$0xf]
    %v245 = vld [vmem:[#allocation7 + $0xc] sm:$0xf]
    %v246 = vld [vmem:[#allocation7 + $0x10] sm:$0xf]
    %v247 = vld [vmem:[#allocation7 + $0x14] sm:$0xf]
    %v248 = vld [vmem:[#allocation7 + $0x18] sm:$0xf]
    %v249 = vld [vmem:[#allocation7 + $0x1c] sm:$0xf]
    %v250 = vld [vmem:[#allocation7 + $0x20] sm:$0xf]
    %v251 = vld [vmem:[#allocation7 + $0x24] sm:$0xf]
    %v252 = vld [vmem:[#allocation7 + $0x28] sm:$0xf]
    %v253 = vld [vmem:[#allocation7 + $0x2c] sm:$0xf]
    %v254 = vld [vmem:[#allocation7 + $0x30] sm:$0xf]
    %v255 = vld [vmem:[#allocation7 + $0x34] sm:$0xf]
    %v256 = vld [vmem:[#allocation7 + $0x38] sm:$0xf]
    %v257 = vld [vmem:[#allocation7 + $0x3c] sm:$0xf]
    %v274 = vunpack.c.l.b16 %v242
    %v275 = vunpack.c.l.b16 %v243
    %v276 = vunpack.c.l.b16 %v244
    %v277 = vunpack.c.l.b16 %v245
    %v278 = vunpack.c.l.b16 %v246
    %v279 = vunpack.c.l.b16 %v247
    %v280 = vunpack.c.l.b16 %v248
    %v281 = vunpack.c.l.b16 %v249
    %v282 = vunpack.c.l.b16 %v250
    %v283 = vunpack.c.l.b16 %v251
    %v284 = vunpack.c.l.b16 %v252
    %v285 = vunpack.c.l.b16 %v253
    %v286 = vunpack.c.l.b16 %v254
    %v287 = vunpack.c.l.b16 %v255
    %v288 = vunpack.c.l.b16 %v256
    %v289 = vunpack.c.l.b16 %v257
    %v290 = vpack.c.b16 %v275, %v274
    %v291 = vpack.c.b16 %v277, %v276
    %v292 = vpack.c.b16 %v279, %v278
    %v293 = vpack.c.b16 %v281, %v280
    %v294 = vpack.c.b16 %v283, %v282
    %v295 = vpack.c.b16 %v285, %v284
    %v296 = vpack.c.b16 %v287, %v286
    %v297 = vpack.c.b16 %v289, %v288
    %306 = vmatprep.subr.bf16.mxu0 0
    %307 = vmatpush1.bf16.msra.mxu0 %v290
    %308 = vmatprep.subr.bf16.mxu0 0
    %309 = vmatpush1.bf16.msra.mxu0 %v291
    %310 = vmatprep.subr.bf16.mxu0 0
    %311 = vmatpush1.bf16.msra.mxu0 %v292
    %312 = vmatprep.subr.bf16.mxu0 0
    %313 = vmatpush1.bf16.msra.mxu0 %v293
    %314 = vmatprep.subr.bf16.mxu0 0
    %315 = vmatpush1.bf16.msra.mxu0 %v294
    %316 = vmatprep.subr.bf16.mxu0 0
    %317 = vmatpush1.bf16.msra.mxu0 %v295
    %318 = vmatprep.subr.bf16.mxu0 0
    %319 = vmatpush1.bf16.msra.mxu0 %v296
    %320 = vmatprep.subr.bf16.mxu0 0
    %321 = vmatpush1.bf16.msra.mxu0 %v297
    %322 = vmatprep.subr.bf16.mxu0 0
    %323 = vmatpush1.bf16.msra.mxu0 0
    %324 = vmatprep.subr.bf16.mxu0 0
    %325 = vmatpush1.bf16.msra.mxu0 0
    %326 = vmatprep.subr.bf16.mxu0 0
    %327 = vmatpush1.bf16.msra.mxu0 0
    %328 = vmatprep.subr.bf16.mxu0 0
    %329 = vmatpush1.bf16.msra.mxu0 0
    %330 = vmatprep.subr.bf16.mxu0 0
    %331 = vmatpush1.bf16.msra.mxu0 0
    %332 = vmatprep.subr.bf16.mxu0 0
    %333 = vmatpush1.bf16.msra.mxu0 0
    %334 = vmatprep.subr.bf16.mxu0 0
    %335 = vmatpush1.bf16.msra.mxu0 0
    %336 = vmatprep.subr.bf16.mxu0 0
    %337 = vmatpush1.bf16.msra.mxu0 0
    %338 = vmatprep.mubr.bf16.mxu0 0
    %339 = vmatmul.mubr.bf16.gmra.mrb[0].mxu0 %v241
    %v340 = vpop.f32.mrb[0].mxu0
    %v341 = vadd.f32 0.0, %v340
    %v342 = vpop.f32.mrb[0].mxu0
    %v343 = vpop.f32.mrb[0].mxu0
    %v344 = vpop.f32.mrb[0].mxu0
    %345 = vdwg.mxu0
    %v346 = vld [vmem:[%s4] sm:$0x1]
    %v348 = vlaneseq
    %v349 = vshrl.u32 %v348, 7
    %v350 = vsub.s32 0, %v349
    %v351 = vrot.slane %v346, %v350
    %v353 = vadd.f32 %v341, %v351
    %vm354 = vcmask 80896
    %355 = vst.msk [vmem:[#allocation8] sm:$0xff] %vm354, %v353
    // Predicated region
    $region34: #{fcnet_forward.1} parent=1 // pred_check
      _
    $region35: #{fcnet_forward.1} parent=1 // pred_check_branch
      %357 = sbr.rel (0) target = $region37
    $region36: #{fcnet_forward.1} parent=1 // pred_region
      %s359 = ssub.s32 128, 128
      %360 = vsyncadd [#allocation4], %s359
      %s362 = sshll.u32 [#allocation8], 4
      %s363 = int_to_ptr.vmem [resolvable:$true] %s362
      %365 = dma.vmem_to_hbm [thread:$0]  %s363, 128, %s5, [#allocation4]
    $region37: #{fcnet_forward.1} parent=1 // pred_fallthru
      _
    // Predicated region
    $region38: #{fcnet_forward.1} parent=1 // pred_check
      _
    $region39: #{fcnet_forward.1} parent=1 // pred_check_branch
      %367 = sbr.rel (0) target = $region41
    $region40: #{fcnet_forward.1} parent=1 // pred_region
      %368 = dma.done [#allocation4], 128
    $region41: #{fcnet_forward.1} parent=1 // pred_fallthru
      _
    %369 = vsyncpa [#allocation3], 1
    %370 = vsyncpa [#allocation6], 1
    %371 = vsyncpa [#allocation4], 1

</llo_original>
